<compile_context>
chip_gen: v5e
topology: v5e:2x2
jax: 0.10.0
libtpu: 0.0.40
codegen_flags: <defaults>
</compile_context>

<pallas_src>
import functools

import jax
import jax.numpy as jnp
from jax.experimental import pallas as pl
from jax.experimental.pallas import tpu as pltpu

_BN_EPS = 1e-5


def _round_up(x, m):
    return (x + m - 1) // m * m


def _cdiv(a, b):
    return -(-a // b)


def _vmem_limit_bytes():
    """Generation-aware scoped-VMEM cap (<= half of physical, <= 32 MiB)."""
    cap = 0
    try:
        cap = int(getattr(pltpu.get_tpu_info(), "vmem_capacity_bytes", 0) or 0)
    except Exception:
        cap = 0
    if cap <= 0:
        cap = 64 * 1024 * 1024        # conservative default (v7x per-core VMEM)
    return int(min(cap // 2, 32 * 1024 * 1024))


def _conv_stats_kernel(*refs, q, rows_blk, block_frames, nfb2, n_frames,
                       n_rows, mask_frames, mask_rows, use_tail):
    """One (row-block, split, frame-block) tile: framed conv + BN partials.

    The conv is decomposed into q shifted (C, hop) x (hop, TF) dots, so the
    framed (nfft, TF) matrix is never materialized anywhere (HBM or VMEM).
    """
    if use_tail:
        cur_ref, tail_ref, w_ref, y_ref, stats_ref = refs
    else:
        cur_ref, w_ref, y_ref, stats_ref = refs
        tail_ref = None

    rb = pl.program_id(0)
    fb = pl.program_id(2)

    frame_ok = None
    if mask_frames:
        fblk = pl.program_id(1) * nfb2 + fb
        t = fblk * block_frames + jax.lax.broadcasted_iota(
            jnp.int32, (1, block_frames), 1)
        frame_ok = t < n_frames

    s1_tot = None
    s2_tot = None
    for ri in range(rows_blk):
        cur = cur_ref[ri]                                        # (hop, TF)
        if use_tail:
            seg = jnp.concatenate([cur, tail_ref[ri]], axis=-1)  # (hop, TF+TW)
        else:
            seg = cur

        acc = None
        for j in range(q):
            rhs = cur if j == 0 else seg[:, j:j + block_frames]
            part = jnp.dot(w_ref[j], rhs, preferred_element_type=jnp.float32)
            acc = part if acc is None else acc + part
        y_ref[ri] = acc                                          # lane-dense (C, TF)

        # Partial BN statistics (single pass), masking padded frames / rows.
        ok = frame_ok
        if mask_rows:
            row_ok = rb * rows_blk + ri < n_rows
            ok = row_ok if ok is None else jnp.logical_and(ok, row_ok)
        ym = acc if ok is None else jnp.where(ok, acc, 0.0)
        s1 = jnp.sum(ym, axis=1, keepdims=True)                  # (C, 1)
        s2 = jnp.sum(ym * ym, axis=1, keepdims=True)             # (C, 1)
        s1_tot = s1 if s1_tot is None else s1_tot + s1
        s2_tot = s2 if s2_tot is None else s2_tot + s2

    @pl.when(fb == 0)
    def _():
        stats_ref[...] = jnp.zeros_like(stats_ref)

    stats_ref[:, 0:1] += s1_tot
    stats_ref[:, 1:2] += s2_tot


def _bn_act_kernel(y_ref, scale_ref, shift_ref, o_ref):
    """Elementwise BN finalize + Hardtanh(0, 20), lane-dense, in place."""
    o_ref[...] = jnp.clip(y_ref[...] * scale_ref[...] + shift_ref[...],
                          0.0, 20.0)


def stft_forward(sample, conv_w, conv_b, gamma, beta, *, nfft, hop):
    """sample: (B, H, W) float -> (B, H_out, n_freq, W_out) float32.

    conv_b is accepted for interface parity but unused: a per-channel conv
    bias is cancelled exactly by the BatchNorm mean subtraction (verified
    against the reference, which keeps the bias).
    """
    del conv_b
    B, H, W = sample.shape
    C = conv_w.shape[0]
    assert W >= nfft, "input shorter than nfft"
    H_out = (H - 1) // hop + 1
    n_frames = (W - nfft) // hop + 1
    R = B * H_out

    q = _cdiv(nfft, hop)                               # chunks per frame
    use_tail = q > 1
    tw = _round_up(q - 1, 128) if use_tail else 128    # tail width / TF granule

    # ---- tiling: large lane-dense frame tiles under a VMEM budget ----
    limit = _vmem_limit_bytes()
    tf_all = _round_up(n_frames, tw)
    rows_blk = 1
    if tf_all < 512 and R > 1:
        rows_blk = max(1, min(512 // tf_all, 8, R // 2))
    per_col = 16 * rows_blk * (hop + C)      # approx bytes per frame column
    fixed = 4 * (3 * rows_blk * hop * tw + 2 * q * C * hop + 8 * C)
    budget = max(limit * 3 // 4 - fixed, per_col * tw)
    tf = min(tf_all, 2048, budget // per_col)
    tf = max(tw, tf // tw * tw)
    nfb = _cdiv(n_frames, tf)
    rb_ct = _cdiv(R, rows_blk)
    # Split the frame axis across a second parallel grid axis when there are
    # too few row blocks to keep both v7x TensorCores busy.
    ns = 2 if (rb_ct <= 3 and rb_ct % 2 == 1 and nfb % 2 == 0) else 1
    nfb2 = nfb // ns
    col_ratio = tf // tw

    mask_frames = (nfb * tf != n_frames)
    mask_rows = (rb_ct * rows_blk != R)

    # ---- wrapper-side input prep: NO nfft/hop frame expansion ----
    # chunksT[r, k, c] = row_r[c*hop + k]; the conv-height subsample (::hop),
    # padding and chunk transpose fuse into a single XLA copy of the raw input.
    nc_pad = nfb * tf + (tw if use_tail else 0)
    w_target = nc_pad * hop
    rows = sample[:, ::hop, :].astype(jnp.float32).reshape(R, W)
    if w_target > W:
        rows = jnp.pad(rows, ((0, 0), (0, w_target - W)))
    elif w_target < W:
        rows = rows[:, :w_target]            # tail never used by a valid frame
    chunks_t = rows.reshape(R, nc_pad, hop).transpose(0, 2, 1)   # (R, hop, NC)

    wq = conv_w.reshape(C, nfft).astype(jnp.float32)
    wq = jnp.pad(wq, ((0, 0), (0, q * hop - nfft)))
    wq = wq.reshape(C, q, hop).transpose(1, 0, 2)                # (q, C, hop)

    kern = functools.partial(
        _conv_stats_kernel, q=q, rows_blk=rows_blk, block_frames=tf, nfb2=nfb2,
        n_frames=n_frames, n_rows=R, mask_frames=mask_frames,
        mask_rows=mask_rows, use_tail=use_tail)

    in_specs = [pl.BlockSpec((rows_blk, hop, tf),
                             lambda r, s, f: (r, 0, s * nfb2 + f))]
    inputs = [chunks_t]
    if use_tail:
        in_specs.append(pl.BlockSpec(
            (rows_blk, hop, tw),
            lambda r, s, f: (r, 0, (s * nfb2 + f + 1) * col_ratio)))
        inputs.append(chunks_t)
    in_specs.append(pl.BlockSpec((q, C, hop), lambda r, s, f: (0, 0, 0)))
    inputs.append(wq)

    # ---- pass 1: framed conv (MXU) + per-(row-block, split) BN partials ----
    y_conv, stats = pl.pallas_call(
        kern,
        out_shape=(jax.ShapeDtypeStruct((R, C, n_frames), jnp.float32),
                   jax.ShapeDtypeStruct((rb_ct, ns, C, 2), jnp.float32)),
        grid=(rb_ct, ns, nfb2),
        in_specs=in_specs,
        out_specs=(pl.BlockSpec((rows_blk, C, tf),
                                lambda r, s, f: (r, 0, s * nfb2 + f)),
                   pl.BlockSpec((None, None, C, 2),
                                lambda r, s, f: (r, s, 0, 0))),
        compiler_params=pltpu.CompilerParams(
            dimension_semantics=("parallel", "parallel", "arbitrary"),
            vmem_limit_bytes=limit),
    )(*inputs)

    # ---- tiny finalize: combine partial statistics -> per-channel affine ----
    count = jnp.float32(R * n_frames)
    tot = jnp.sum(stats, axis=(0, 1))                  # (C, 2)
    mean = tot[:, 0] / count
    var = tot[:, 1] / count - mean * mean              # biased var (training BN)
    scale = gamma.astype(jnp.float32) * jax.lax.rsqrt(var + _BN_EPS)
    shift = beta.astype(jnp.float32) - mean * scale

    # ---- pass 2: BN apply + Hardtanh(0, 20), in place, lane-dense ----
    out = pl.pallas_call(
        _bn_act_kernel,
        out_shape=jax.ShapeDtypeStruct((R, C, n_frames), jnp.float32),
        grid=(rb_ct, nfb),
        in_specs=[pl.BlockSpec((rows_blk, C, tf), lambda r, f: (r, 0, f)),
                  pl.BlockSpec((C, 1), lambda r, f: (0, 0)),
                  pl.BlockSpec((C, 1), lambda r, f: (0, 0))],
        out_specs=pl.BlockSpec((rows_blk, C, tf), lambda r, f: (r, 0, f)),
        input_output_aliases={0: 0},
        compiler_params=pltpu.CompilerParams(
            dimension_semantics=("parallel", "parallel"),
            vmem_limit_bytes=limit),
    )(y_conv, scale.reshape(C, 1), shift.reshape(C, 1))

    # (R, C, W_out) already matches PyTorch's permute(0, 2, 1, 3) layout:
    # a pure metadata reshape, no transpose, no trailing slice.
    return out.reshape(B, H_out, C, n_frames)


def _reference_forward(sample, conv_w, conv_b, gamma, beta, *, nfft, hop):
    """Pure-JAX reference mirroring the PyTorch graph (bias kept)."""
    x4 = sample[:, None, :, :].astype(jnp.float32)
    y = jax.lax.conv_general_dilated(
        x4, conv_w.astype(jnp.float32), window_strides=(hop, hop),
        padding="VALID", dimension_numbers=("NCHW", "OIHW", "NCHW"))
    y = y + conv_b[None, :, None, None]
    mean = jnp.mean(y, axis=(0, 2, 3), keepdims=True)
    var = jnp.var(y, axis=(0, 2, 3), keepdims=True)
    y = (y - mean) / jnp.sqrt(var + _BN_EPS)
    y = y * gamma[None, :, None, None] + beta[None, :, None, None]
    y = jnp.clip(y, 0.0, 20.0)
    return jnp.transpose(y, (0, 2, 1, 3))


if __name__ == "__main__":
    key = jax.random.PRNGKey(0)

    configs = [
        # (nfft, hop, B, H, W)   with n_freq = nfft // 2 + 1
        (16, 8, 2, 1, 2056),    # n_frames=256: fully unmasked fast path
        (16, 8, 2, 33, 103),    # R=10, n_frames=11: row merging + row/frame masks
        (16, 5, 1, 1, 96),      # hop does not divide nfft (q=4, padded weight)
        (16, 16, 1, 1, 272),    # hop == nfft (q=1): no overlap tail input
        (16, 8, 1, 1, 16408),   # n_frames=2050: 2 frame blocks + core-split path
    ]

    for cfg_i, (nfft, hop, B, H, W) in enumerate(configs):
        n_freq = nfft // 2 + 1
        keys = jax.random.split(jax.random.fold_in(key, cfg_i), 5)
        sample = jax.random.normal(keys[0], (B, H, W), dtype=jnp.float32)
        conv_w = jax.random.normal(keys[1], (n_freq, 1, 1, nfft), jnp.float32) * 0.1
        conv_b = jax.random.normal(keys[2], (n_freq,), jnp.float32) * 0.1
        gamma = 1.0 + 0.1 * jax.random.normal(keys[3], (n_freq,), jnp.float32)
        beta = 0.1 * jax.random.normal(keys[4], (n_freq,), jnp.float32)

        fwd = jax.jit(functools.partial(stft_forward, nfft=nfft, hop=hop))
        out = jax.block_until_ready(fwd(sample, conv_w, conv_b, gamma, beta))

        ref = _reference_forward(sample, conv_w, conv_b, gamma, beta,
                                 nfft=nfft, hop=hop)
        H_out = (H - 1) // hop + 1
        W_out = (W - nfft) // hop + 1
        assert out.shape == ref.shape == (B, H_out, n_freq, W_out), out.shape
        err = jnp.max(jnp.abs(out - ref))
        assert jnp.allclose(out, ref, atol=1e-4, rtol=1e-4), (
            f"config {cfg_i}: max abs err {err}")

    print("KERNEL_OK")
</pallas_src>

<mosaic_0001>
module attributes {stable_mosaic.version = 11 : i64} {
  func.func @_bn_act_kernel(%arg0: i32, %arg1: i32, %arg2: memref<1x9x256xf32, #tpu.memory_space<vmem>>, %arg3: memref<9x1xf32, #tpu.memory_space<vmem>>, %arg4: memref<9x1xf32, #tpu.memory_space<vmem>>, %arg5: memref<1x9x256xf32, #tpu.memory_space<vmem>>) attributes {dimension_semantics = [#tpu.dimension_semantics<parallel>, #tpu.dimension_semantics<parallel>], iteration_bounds = array<i64: 2, 1>, scalar_prefetch = 0 : i64, scratch_operands = 0 : i64, tpu.core_type = #tpu.core_type<tc>, window_params = [{transform_indices = @transform_0, window_bounds = array<i64: 1, 9, 256>}, {pipeline_mode = #tpu.pipeline_mode<synchronous>, transform_indices = @transform_1, window_bounds = array<i64: 9, 1>}, {pipeline_mode = #tpu.pipeline_mode<synchronous>, transform_indices = @transform_2, window_bounds = array<i64: 9, 1>}, {transform_indices = @transform_3, window_bounds = array<i64: 1, 9, 256>}]} {
    %c0 = arith.constant 0 : index
    %c0_0 = arith.constant 0 : index
    %c0_1 = arith.constant 0 : index
    %0 = vector.load %arg2[%c0, %c0_0, %c0_1] : memref<1x9x256xf32, #tpu.memory_space<vmem>>, vector<1x9x256xf32>
    %c0_2 = arith.constant 0 : index
    %c0_3 = arith.constant 0 : index
    %1 = vector.load %arg3[%c0_2, %c0_3] : memref<9x1xf32, #tpu.memory_space<vmem>>, vector<9x1xf32>
    %2 = vector.shape_cast %1 : vector<9x1xf32> to vector<1x9x1xf32>
    %3 = vector.broadcast %2 : vector<1x9x1xf32> to vector<1x9x256xf32>
    %4 = arith.mulf %0, %3 : vector<1x9x256xf32>
    %c0_4 = arith.constant 0 : index
    %c0_5 = arith.constant 0 : index
    %5 = vector.load %arg4[%c0_4, %c0_5] : memref<9x1xf32, #tpu.memory_space<vmem>>, vector<9x1xf32>
    %6 = vector.shape_cast %5 : vector<9x1xf32> to vector<1x9x1xf32>
    %7 = vector.broadcast %6 : vector<1x9x1xf32> to vector<1x9x256xf32>
    %8 = arith.addf %4, %7 : vector<1x9x256xf32>
    %cst = arith.constant 0.000000e+00 : f32
    %cst_6 = arith.constant 2.000000e+01 : f32
    %9 = vector.broadcast %cst : f32 to vector<1x9x256xf32>
    %10 = arith.maximumf %9, %8 : vector<1x9x256xf32>
    %11 = vector.broadcast %cst_6 : f32 to vector<1x9x256xf32>
    %12 = arith.minimumf %11, %10 : vector<1x9x256xf32>
    %c0_7 = arith.constant 0 : index
    %c0_8 = arith.constant 0 : index
    %c0_9 = arith.constant 0 : index
    %13 = vector.load %arg5[%c0_7, %c0_8, %c0_9] : memref<1x9x256xf32, #tpu.memory_space<vmem>>, vector<1x9x256xf32>
    tpu.vector_store %arg5[%c0_7, %c0_8, %c0_9], %12 {strides = array<i32>} : memref<1x9x256xf32, #tpu.memory_space<vmem>>, vector<1x9x256xf32>,
    return
  }
  func.func @transform_0(%arg0: i32, %arg1: i32) -> (i32, i32, i32) {
    %c0_i32 = arith.constant 0 : i32
    %c0_i32_0 = arith.constant 0 : i32
    return %arg0, %c0_i32, %arg1 : i32, i32, i32
  }
  func.func @transform_1(%arg0: i32, %arg1: i32) -> (i32, i32) {
    %c0_i32 = arith.constant 0 : i32
    %c0_i32_0 = arith.constant 0 : i32
    %c0_i32_1 = arith.constant 0 : i32
    return %c0_i32, %c0_i32_0 : i32, i32
  }
  func.func @transform_2(%arg0: i32, %arg1: i32) -> (i32, i32) {
    %c0_i32 = arith.constant 0 : i32
    %c0_i32_0 = arith.constant 0 : i32
    %c0_i32_1 = arith.constant 0 : i32
    return %c0_i32, %c0_i32_0 : i32, i32
  }
  func.func @transform_3(%arg0: i32, %arg1: i32) -> (i32, i32, i32) {
    %c0_i32 = arith.constant 0 : i32
    %c0_i32_0 = arith.constant 0 : i32
    return %arg0, %c0_i32, %arg1 : i32, i32, i32
  }
}

module attributes {stable_mosaic.version = 11 : i64} {
  func.func @_conv_stats_kernel(%arg0: i32, %arg1: i32, %arg2: i32, %arg3: memref<1x8x256xf32, #tpu.memory_space<vmem>>, %arg4: memref<1x8x128xf32, #tpu.memory_space<vmem>>, %arg5: memref<2x9x8xf32, #tpu.memory_space<vmem>>, %arg6: memref<1x9x256xf32, #tpu.memory_space<vmem>>, %arg7: memref<1x1x9x2xf32, #tpu.memory_space<vmem>>) attributes {dimension_semantics = [#tpu.dimension_semantics<parallel>, #tpu.dimension_semantics<parallel>, #tpu.dimension_semantics<arbitrary>], iteration_bounds = array<i64: 2, 1, 1>, scalar_prefetch = 0 : i64, scratch_operands = 0 : i64, tpu.core_type = #tpu.core_type<tc>, window_params = [{transform_indices = @transform_0, window_bounds = array<i64: 1, 8, 256>}, {transform_indices = @transform_1, window_bounds = array<i64: 1, 8, 128>}, {pipeline_mode = #tpu.pipeline_mode<synchronous>, transform_indices = @transform_2, window_bounds = array<i64: 2, 9, 8>}, {transform_indices = @transform_3, window_bounds = array<i64: 1, 9, 256>}, {transform_indices = @transform_4, window_bounds = array<i64: 1, 1, 9, 2>}]} {
    %c0 = arith.constant 0 : index
    %c0_0 = arith.constant 0 : index
    %c0_1 = arith.constant 0 : index
    %0 = vector.load %arg3[%c0, %c0_0, %c0_1] : memref<1x8x256xf32, #tpu.memory_space<vmem>>, vector<1x8x256xf32>
    %1 = vector.shape_cast %0 : vector<1x8x256xf32> to vector<8x256xf32>
    %c0_2 = arith.constant 0 : index
    %c0_3 = arith.constant 0 : index
    %c0_4 = arith.constant 0 : index
    %2 = vector.load %arg4[%c0_2, %c0_3, %c0_4] : memref<1x8x128xf32, #tpu.memory_space<vmem>>, vector<1x8x128xf32>
    %3 = vector.shape_cast %2 : vector<1x8x128xf32> to vector<8x128xf32>
    %4 = tpu.concatenate %1, %3 in 1 : vector<8x256xf32>, vector<8x128xf32> -> vector<8x384xf32>
    %c0_5 = arith.constant 0 : index
    %c0_6 = arith.constant 0 : index
    %c0_7 = arith.constant 0 : index
    %5 = vector.load %arg5[%c0_5, %c0_6, %c0_7] : memref<2x9x8xf32, #tpu.memory_space<vmem>>, vector<1x9x8xf32>
    %6 = vector.shape_cast %5 : vector<1x9x8xf32> to vector<9x8xf32>
    %cst = arith.constant dense<0.000000e+00> : vector<9x256xf32>
    %7 = tpu.matmul %6, %1, %cst {dimension_numbers = #tpu.dot_dimension_numbers<[1], [0], [0], [1], [0, 0, 1, 1], [], []>} : vector<9x8xf32>, vector<8x256xf32>, vector<9x256xf32> -> vector<9x256xf32>
    %8 = vector.extract_strided_slice %4 {offsets = [0, 1], sizes = [8, 256], strides = [1, 1]} : vector<8x384xf32> to vector<8x256xf32>
    %c1 = arith.constant 1 : index
    %c0_8 = arith.constant 0 : index
    %c0_9 = arith.constant 0 : index
    %9 = vector.load %arg5[%c1, %c0_8, %c0_9] : memref<2x9x8xf32, #tpu.memory_space<vmem>>, vector<1x9x8xf32>
    %10 = vector.shape_cast %9 : vector<1x9x8xf32> to vector<9x8xf32>
    %cst_10 = arith.constant dense<0.000000e+00> : vector<9x256xf32>
    %11 = tpu.matmul %10, %8, %cst_10 {dimension_numbers = #tpu.dot_dimension_numbers<[1], [0], [0], [1], [0, 0, 1, 1], [], []>} : vector<9x8xf32>, vector<8x256xf32>, vector<9x256xf32> -> vector<9x256xf32>
    %12 = arith.addf %7, %11 : vector<9x256xf32>
    %c0_11 = arith.constant 0 : index
    %c0_12 = arith.constant 0 : index
    %c0_13 = arith.constant 0 : index
    %13 = vector.load %arg6[%c0_11, %c0_12, %c0_13] : memref<1x9x256xf32, #tpu.memory_space<vmem>>, vector<1x9x256xf32>
    %14 = vector.shape_cast %13 : vector<1x9x256xf32> to vector<9x256xf32>
    %15 = vector.shape_cast %12 : vector<9x256xf32> to vector<1x9x256xf32>
    tpu.vector_store %arg6[%c0_11, %c0_12, %c0_13], %15 {strides = array<i32>} : memref<1x9x256xf32, #tpu.memory_space<vmem>>, vector<1x9x256xf32>,
    %cst_14 = arith.constant dense<0.000000e+00> : vector<9xf32>
    %16 = vector.multi_reduction <add>, %12, %cst_14 [1] : vector<9x256xf32> to vector<9xf32>
    %17 = vector.shape_cast %16 : vector<9xf32> to vector<9x1xf32>
    %18 = arith.mulf %12, %12 : vector<9x256xf32>
    %cst_15 = arith.constant dense<0.000000e+00> : vector<9xf32>
    %19 = vector.multi_reduction <add>, %18, %cst_15 [1] : vector<9x256xf32> to vector<9xf32>
    %20 = vector.shape_cast %19 : vector<9xf32> to vector<9x1xf32>
    %c0_i32 = arith.constant 0 : i32
    %21 = arith.cmpi eq, %arg2, %c0_i32 : i32
    %22 = arith.extui %21 : i1 to i32
    %c0_i32_16 = arith.constant 0 : i32
    %23 = arith.cmpi ne, %22, %c0_i32_16 : i32
    scf.if %23 {
      %cst_33 = arith.constant 0.000000e+00 : f32
      %36 = vector.broadcast %cst_33 : f32 to vector<9x2xf32>
      %c0_34 = arith.constant 0 : index
      %c0_35 = arith.constant 0 : index
      %c0_36 = arith.constant 0 : index
      %c0_37 = arith.constant 0 : index
      %37 = vector.load %arg7[%c0_34, %c0_35, %c0_36, %c0_37] : memref<1x1x9x2xf32, #tpu.memory_space<vmem>>, vector<1x1x9x2xf32>
      %38 = vector.shape_cast %37 : vector<1x1x9x2xf32> to vector<9x2xf32>
      %39 = vector.shape_cast %36 : vector<9x2xf32> to vector<1x1x9x2xf32>
      tpu.vector_store %arg7[%c0_34, %c0_35, %c0_36, %c0_37], %39 {strides = array<i32>} : memref<1x1x9x2xf32, #tpu.memory_space<vmem>>, vector<1x1x9x2xf32>,
    } else {
    }
    %c0_17 = arith.constant 0 : index
    %c0_18 = arith.constant 0 : index
    %c0_19 = arith.constant 0 : index
    %c0_20 = arith.constant 0 : index
    %24 = vector.load %arg7[%c0_17, %c0_18, %c0_19, %c0_20] : memref<1x1x9x2xf32, #tpu.memory_space<vmem>>, vector<1x1x9x1xf32>
    %25 = vector.shape_cast %24 : vector<1x1x9x1xf32> to vector<9x1xf32>
    %26 = arith.addf %25, %17 : vector<9x1xf32>
    %c0_21 = arith.constant 0 : index
    %c0_22 = arith.constant 0 : index
    %c0_23 = arith.constant 0 : index
    %c0_24 = arith.constant 0 : index
    %27 = vector.load %arg7[%c0_21, %c0_22, %c0_23, %c0_24] : memref<1x1x9x2xf32, #tpu.memory_space<vmem>>, vector<1x1x9x1xf32>
    %28 = vector.shape_cast %27 : vector<1x1x9x1xf32> to vector<9x1xf32>
    %29 = vector.shape_cast %26 : vector<9x1xf32> to vector<1x1x9x1xf32>
    tpu.vector_store %arg7[%c0_21, %c0_22, %c0_23, %c0_24], %29 {strides = array<i32>} : memref<1x1x9x2xf32, #tpu.memory_space<vmem>>, vector<1x1x9x1xf32>,
    %c0_25 = arith.constant 0 : index
    %c0_26 = arith.constant 0 : index
    %c0_27 = arith.constant 0 : index
    %c1_28 = arith.constant 1 : index
    %30 = vector.load %arg7[%c0_25, %c0_26, %c0_27, %c1_28] : memref<1x1x9x2xf32, #tpu.memory_space<vmem>>, vector<1x1x9x1xf32>
    %31 = vector.shape_cast %30 : vector<1x1x9x1xf32> to vector<9x1xf32>
    %32 = arith.addf %31, %20 : vector<9x1xf32>
    %c0_29 = arith.constant 0 : index
    %c0_30 = arith.constant 0 : index
    %c0_31 = arith.constant 0 : index
    %c1_32 = arith.constant 1 : index
    %33 = vector.load %arg7[%c0_29, %c0_30, %c0_31, %c1_32] : memref<1x1x9x2xf32, #tpu.memory_space<vmem>>, vector<1x1x9x1xf32>
    %34 = vector.shape_cast %33 : vector<1x1x9x1xf32> to vector<9x1xf32>
    %35 = vector.shape_cast %32 : vector<9x1xf32> to vector<1x1x9x1xf32>
    tpu.vector_store %arg7[%c0_29, %c0_30, %c0_31, %c1_32], %35 {strides = array<i32>} : memref<1x1x9x2xf32, #tpu.memory_space<vmem>>, vector<1x1x9x1xf32>,
    return
  }
  func.func @transform_0(%arg0: i32, %arg1: i32, %arg2: i32) -> (i32, i32, i32) {
    %c1_i32 = arith.constant 1 : i32
    %0 = arith.muli %arg1, %c1_i32 : i32
    %1 = arith.addi %0, %arg2 : i32
    %c0_i32 = arith.constant 0 : i32
    %c0_i32_0 = arith.constant 0 : i32
    return %arg0, %c0_i32, %1 : i32, i32, i32
  }
  func.func @transform_1(%arg0: i32, %arg1: i32, %arg2: i32) -> (i32, i32, i32) {
    %c1_i32 = arith.constant 1 : i32
    %0 = arith.muli %arg1, %c1_i32 : i32
    %1 = arith.addi %0, %arg2 : i32
    %c1_i32_0 = arith.constant 1 : i32
    %2 = arith.addi %1, %c1_i32_0 : i32
    %c2_i32 = arith.constant 2 : i32
    %3 = arith.muli %2, %c2_i32 : i32
    %c0_i32 = arith.constant 0 : i32
    %c0_i32_1 = arith.constant 0 : i32
    return %arg0, %c0_i32, %3 : i32, i32, i32
  }
  func.func @transform_2(%arg0: i32, %arg1: i32, %arg2: i32) -> (i32, i32, i32) {
    %c0_i32 = arith.constant 0 : i32
    %c0_i32_0 = arith.constant 0 : i32
    %c0_i32_1 = arith.constant 0 : i32
    %c0_i32_2 = arith.constant 0 : i32
    return %c0_i32, %c0_i32_0, %c0_i32_1 : i32, i32, i32
  }
  func.func @transform_3(%arg0: i32, %arg1: i32, %arg2: i32) -> (i32, i32, i32) {
    %c1_i32 = arith.constant 1 : i32
    %0 = arith.muli %arg1, %c1_i32 : i32
    %1 = arith.addi %0, %arg2 : i32
    %c0_i32 = arith.constant 0 : i32
    %c0_i32_0 = arith.constant 0 : i32
    return %arg0, %c0_i32, %1 : i32, i32, i32
  }
  func.func @transform_4(%arg0: i32, %arg1: i32, %arg2: i32) -> (i32, i32, i32, i32) {
    %c0_i32 = arith.constant 0 : i32
    %c0_i32_0 = arith.constant 0 : i32
    %c0_i32_1 = arith.constant 0 : i32
    return %arg0, %arg1, %c0_i32, %c0_i32_0 : i32, i32, i32, i32
  }
}

</mosaic_0001>

<llo_original>
// kernel: stft_forward.3
$region0: #{stft_forward.3}
  #allocation0 [shape = 'u32[]', space=smem, size = 0x4, offset = 0x4, fixed_abs, tag = 'smem constant byte address 0x4 - core index']
  #allocation1 [shape = 'u32[72,128]{1,0:T(1,128)}', space=vmem, size = 0x9000, scoped, tag = 'internal scratch']
  %s0 = inlined_call_operand.vmem [shape: f32[2,9,256], index: 0, kind: input, shape index: {}, may-alias: {0,3}]
  %s1 = inlined_call_operand.vmem [shape: f32[9,1], index: 1, kind: input, shape index: {}]
  %s2 = inlined_call_operand.vmem [shape: f32[9,1], index: 2, kind: input, shape index: {}]
  %s3 = inlined_call_operand.vmem [shape: f32[2,9,256], index: 3, kind: output, shape index: {}, may-alias: {0,3}]
  %s4 = sld [smem:[#allocation0]]
  $region45: #{stft_forward.3} parent=0
    _
  %s6 = ssub.s32 1, %s4
  %s7 = scalar_select 0, %s6, %s4
  loop: start=0, step=1, limit=4
  $region2: #{stft_forward.3} parent=0 // loop_pre_header
    _
  $region3: #{stft_forward.3} parent=0 // loop_header
    %s9 = sphi 0, %s13
    %p10 = scmp.ge.s32.totalorder %s9, 4
    %s16 = sphi 0, %s28
    %s17 = sphi 0, %s24
    %s18 = sphi 0, %s16
    %s19 = sphi 0, %s17
    %s20 = sphi 0, %s18
    %s21 = sphi 0, %s19
    %s33 = sphi 0, %s35
    %s36 = sphi 0, %s33
    %s37 = sphi 0, %s36
    %s53 = sphi 0, %s37
    %s57 = sphi 0, %s57
    %s59 = sphi 0, %s57
    %s60 = sphi 0, %s59
    %s74 = sphi 0, %s60
    %s78 = sphi 0, %s78
    %s80 = sphi 0, %s78
    %s81 = sphi 0, %s80
    %s95 = sphi 0, %s81
    %s103 = sphi 0, %s105
    %s106 = sphi 0, %s103
    %s107 = sphi 0, %s106
    %s123 = sphi 0, %s107
  $region4: #{stft_forward.3} parent=0 // loop_header_branch
    %12 = sbr.rel (%p10) target = $region8
  $region5: #{stft_forward.3} parent=0 // loop_body
    %s14 = ssub.s32 %s9, 1
    %s15 = ssub.s32 %s9, 2
    %s22 = sadd.s32 1, %s17
    %p23 = scmp.ge.s32.totalorder %s22, 1
    %s24 = scalar_select %p23, 0, %s22
    %s25 = sadd.s32 1, %s16
    %s26 = scalar_select %p23, %s25, %s16
    %p27 = scmp.ge.s32.totalorder %s26, 2
    %s28 = scalar_select %p27, 0, %s26
    %s29 = ssub.s32 %s16, %s28
    %s30 = ssub.s32 %s17, %s24
    %s31 = sor.u32 %s29, %s30
    %p32 = scmp.eq.s32.totalorder %s31, 0
    %s34 = sadd.s32 %s33, 1
    %s35 = scalar_select %p32, %s33, %s34
    %p38 = pneg %p32
    %p39 = scmp.eq.s32.totalorder %s9, 1
    %p40 = por %p38, %p39
    %p41 = scmp.ne.s32.totalorder %s33, %s36
    %p42 = scmp.eq.s32.totalorder %s9, 0
    %p43 = por %p41, %p42
    %p44 = scmp.ne.s32.totalorder %s33, %s36
    %p45 = scmp.eq.s32.totalorder %s14, 1
    %p46 = por %p44, %p45
    %p47 = scmp.ne.s32.totalorder %s36, %s37
    %p48 = scmp.eq.s32.totalorder %s14, 0
    %p49 = por %p47, %p48
    %p50 = scmp.ne.s32.totalorder %s36, %s37
    %p51 = scmp.eq.s32.totalorder %s15, 1
    %p52 = por %p50, %p51
    %p54 = scmp.ne.s32.totalorder %s37, %s53
    %p55 = scmp.eq.s32.totalorder %s15, 0
    %p56 = por %p54, %p55
    %s58 = sadd.s32 %s57, 1
    %p61 = scmp.eq.s32.totalorder %s9, 1
    %p62 = scmp.ne.s32.totalorder %s57, %s59
    %p63 = scmp.eq.s32.totalorder %s9, 0
    %p64 = por %p62, %p63
    %p65 = scmp.ne.s32.totalorder %s57, %s59
    %p66 = scmp.eq.s32.totalorder %s14, 1
    %p67 = por %p65, %p66
    %p68 = scmp.ne.s32.totalorder %s59, %s60
    %p69 = scmp.eq.s32.totalorder %s14, 0
    %p70 = por %p68, %p69
    %p71 = scmp.ne.s32.totalorder %s59, %s60
    %p72 = scmp.eq.s32.totalorder %s15, 1
    %p73 = por %p71, %p72
    %p75 = scmp.ne.s32.totalorder %s60, %s74
    %p76 = scmp.eq.s32.totalorder %s15, 0
    %p77 = por %p75, %p76
    %s79 = sadd.s32 %s78, 1
    %p82 = scmp.eq.s32.totalorder %s9, 1
    %p83 = scmp.ne.s32.totalorder %s78, %s80
    %p84 = scmp.eq.s32.totalorder %s9, 0
    %p85 = por %p83, %p84
    %p86 = scmp.ne.s32.totalorder %s78, %s80
    %p87 = scmp.eq.s32.totalorder %s14, 1
    %p88 = por %p86, %p87
    %p89 = scmp.ne.s32.totalorder %s80, %s81
    %p90 = scmp.eq.s32.totalorder %s14, 0
    %p91 = por %p89, %p90
    %p92 = scmp.ne.s32.totalorder %s80, %s81
    %p93 = scmp.eq.s32.totalorder %s15, 1
    %p94 = por %p92, %p93
    %p96 = scmp.ne.s32.totalorder %s81, %s95
    %p97 = scmp.eq.s32.totalorder %s15, 0
    %p98 = por %p96, %p97
    %s99 = ssub.s32 %s16, %s28
    %s100 = ssub.s32 %s17, %s24
    %s101 = sor.u32 %s99, %s100
    %p102 = scmp.eq.s32.totalorder %s101, 0
    %s104 = sadd.s32 %s103, 1
    %s105 = scalar_select %p102, %s103, %s104
    %p108 = pneg %p102
    %p109 = scmp.eq.s32.totalorder %s9, 1
    %p110 = por %p108, %p109
    %p111 = scmp.ne.s32.totalorder %s103, %s106
    %p112 = scmp.eq.s32.totalorder %s9, 0
    %p113 = por %p111, %p112
    %p114 = scmp.ne.s32.totalorder %s103, %s106
    %p115 = scmp.eq.s32.totalorder %s14, 1
    %p116 = por %p114, %p115
    %p117 = scmp.ne.s32.totalorder %s106, %s107
    %p118 = scmp.eq.s32.totalorder %s14, 0
    %p119 = por %p117, %p118
    %p120 = scmp.ne.s32.totalorder %s106, %s107
    %p121 = scmp.eq.s32.totalorder %s15, 1
    %p122 = por %p120, %p121
    %p124 = scmp.ne.s32.totalorder %s107, %s123
    %p125 = scmp.eq.s32.totalorder %s15, 0
    %p126 = por %p124, %p125
    %p127 = scmp.le.s32.totalorder 1, %s9
    %p128 = scmp.lt.s32.totalorder %s9, 3
    %p129 = pnand %p127, %p128
    %p130 = pneg %p129
    // Predicated region
    $region9: #{stft_forward.3} parent=5 // pred_check
      _
    $region10: #{stft_forward.3} parent=5 // pred_check_branch
      %132 = sbr.rel (%p129) target = $region12
    $region11: #{stft_forward.3} parent=5 // pred_region
      %s133 = ssub.s32 %s9, 1
      // Predicated region
      $region13: #{stft_forward.3} parent=11 // pred_check
        %p134 = pneg %p70
      $region14: #{stft_forward.3} parent=11 // pred_check_branch
        %136 = sbr.rel (%p134) target = $region16
      $region15: #{stft_forward.3} parent=11 // pred_region
        _
      $region16: #{stft_forward.3} parent=11 // pred_fallthru
        _
      // Predicated region
      $region17: #{stft_forward.3} parent=11 // pred_check
        %p137 = pneg %p91
      $region18: #{stft_forward.3} parent=11 // pred_check_branch
        %139 = sbr.rel (%p137) target = $region20
      $region19: #{stft_forward.3} parent=11 // pred_region
        _
      $region20: #{stft_forward.3} parent=11 // pred_fallthru
        _
    $region12: #{stft_forward.3} parent=5 // pred_fallthru
      _
    %p140 = scmp.lt.s32.totalorder %s9, 2
    // Predicated region
    $region21: #{stft_forward.3} parent=5 // pred_check
      %p141 = pneg %p140
    $region22: #{stft_forward.3} parent=5 // pred_check_branch
      %143 = sbr.rel (%p141) target = $region24
    $region23: #{stft_forward.3} parent=5 // pred_region
      // Predicated region
      $region25: #{stft_forward.3} parent=23 // pred_check
        %p144 = pneg %p43
      $region26: #{stft_forward.3} parent=23 // pred_check_branch
        %146 = sbr.rel (%p144) target = $region28
      $region27: #{stft_forward.3} parent=23 // pred_region
        %s147 = smul.u32 2, %s17
        %p148 = scmp.lt.s32.totalorder %s16, 1
        %s149 = scalar_select %p148, %s16, 1
        %p150 = scmp.lt.s32.totalorder %s147, 1
        %s151 = scalar_select %p150, %s147, 1
        %s152 = smul.addr %s149, 4
        %s153 = sadd.s32 %s151, %s152
        %s154 = smul.addr %s153, 8
        %s155 = scalar_lea.vmem %s0, %s154
        %s156 = smul.u32 2, %s17
      $region28: #{stft_forward.3} parent=23 // pred_fallthru
        _
    $region24: #{stft_forward.3} parent=5 // pred_fallthru
      _
    %p157 = scmp.le.s32.totalorder 1, %s9
    %p158 = scmp.lt.s32.totalorder %s9, 3
    %p159 = pnand %p157, %p158
    %p160 = pneg %p159
    // Predicated region
    $region29: #{stft_forward.3} parent=5 // pred_check
      _
    $region30: #{stft_forward.3} parent=5 // pred_check_branch
      %162 = sbr.rel (%p159) target = $region32
    $region31: #{stft_forward.3} parent=5 // pred_region
      %s163 = ssub.s32 %s9, 1
      %s164 = smul.u32 2, %s19
      %p165 = scmp.lt.s32.totalorder %s18, 1
      %s166 = scalar_select %p165, %s18, 1
      %p167 = scmp.lt.s32.totalorder %s164, 1
      %s168 = scalar_select %p167, %s164, 1
      %s169 = smul.addr %s166, 4
      %s170 = sadd.s32 %s168, %s169
      %s171 = smul.addr %s170, 8
      %s172 = scalar_lea.vmem %s0, %s171
      %p173 = pneg %p49
      %p174 = pneg %p46
      %p175 = pneg %p70
      %p176 = pneg %p67
      %p177 = pneg %p91
      %p178 = pneg %p88
      %p179 = pneg %p119
      %p180 = pneg %p116
      %s181 = smul.u32 2, %s19
      %p182 = scmp.lt.s32.totalorder %s18, 1
      %s183 = scalar_select %p182, %s18, 1
      %p184 = scmp.lt.s32.totalorder %s181, 1
      %s185 = scalar_select %p184, %s181, 1
      %s186 = smul.addr %s183, 4
      %s187 = sadd.s32 %s185, %s186
      %s188 = smul.addr %s187, 8
      %s189 = scalar_lea.vmem %s3, %s188
      %s190 = smul.u32 2, %s19
      %p191 = scmp.lt.s32.totalorder %s18, 1
      %s192 = scalar_select %p191, %s18, 1
      %p193 = scmp.lt.s32.totalorder %s190, 1
      %s194 = scalar_select %p193, %s190, 1
      %s195 = smul.addr %s192, 4
      %s196 = sadd.s32 %s194, %s195
      %s197 = smul.addr %s196, 8
      %s198 = scalar_lea.vmem %s0, %s197
      %s199 = smul.u32 2, %s19
      %s200 = smul.u32 2, %s19
      %p201 = scmp.lt.s32.totalorder %s18, 1
      %s202 = scalar_select %p201, %s18, 1
      %p203 = scmp.lt.s32.totalorder %s200, 1
      %s204 = scalar_select %p203, %s200, 1
      %s205 = smul.addr %s202, 4
      %s206 = sadd.s32 %s204, %s205
      %s207 = smul.addr %s206, 8
      %s208 = scalar_lea.vmem %s3, %s207
      %s209 = smul.u32 2, %s19
      %v210 = vld [vmem:[%s198] sm:$0xff]
      %v211 = vld [vmem:[%s198 + $0x8] sm:$0xff]
      %v212 = vld [vmem:[%s198 + $0x10] sm:$0x1]
      %v213 = vld [vmem:[%s198 + $0x18] sm:$0x1]
      %v214 = vld [vmem:[%s1] sm:$0xff]
      %v215 = vld [vmem:[%s1 + $0x8] sm:$0x1]
      %217 = vset.pattern.permute.xlu0 0
      %218 = vperm.xlu0 %217, %v214
      %v219 = vpop.permute.xlu0 %218
      %222 = vset.pattern.permute.xlu0 0
      %223 = vperm.xlu0 %222, %v215
      %v224 = vpop.permute.xlu0 %223
      %v226 = vmul.f32 %v210, %v219
      %v227 = vmul.f32 %v211, %v219
      %v228 = vmul.f32 %v212, %v224
      %v229 = vmul.f32 %v213, %v224
      %v230 = vld [vmem:[%s2] sm:$0xff]
      %v231 = vld [vmem:[%s2 + $0x8] sm:$0x1]
      %233 = vset.pattern.permute.xlu0 0
      %234 = vperm.xlu0 %233, %v230
      %v235 = vpop.permute.xlu0 %234
      %238 = vset.pattern.permute.xlu0 0
      %239 = vperm.xlu0 %238, %v231
      %v240 = vpop.permute.xlu0 %239
      %v242 = vadd.f32 %v226, %v235
      %v243 = vadd.f32 %v227, %v235
      %v244 = vadd.f32 %v228, %v240
      %v245 = vadd.f32 %v229, %v240
      %v246 = vmax.f32 %v242, 0.0
      %v247 = vmax.f32 %v243, 0.0
      %v248 = vmax.f32 %v244, 0.0
      %v249 = vmax.f32 %v245, 0.0
      %v250 = vmin.f32 %v246, 20.0
      %v251 = vmin.f32 %v247, 20.0
      %v252 = vmin.f32 %v248, 20.0
      %v253 = vmin.f32 %v249, 20.0
      %254 = vst [vmem:[%s208] sm:$0xff] %v250
      %255 = vst [vmem:[%s208 + $0x8] sm:$0xff] %v251
      %256 = vst [vmem:[%s208 + $0x10] sm:$0x1] %v252
      %257 = vst [vmem:[%s208 + $0x18] sm:$0x1] %v253
      %s258 = smul.u32 2, %s19
      %p259 = scmp.lt.s32.totalorder %s18, 1
      %s260 = scalar_select %p259, %s18, 1
      %p261 = scmp.lt.s32.totalorder %s258, 1
      %s262 = scalar_select %p261, %s258, 1
      %s263 = smul.addr %s260, 4
      %s264 = sadd.s32 %s262, %s263
      %s265 = smul.addr %s264, 8
      %s266 = scalar_lea.vmem %s3, %s265
      // Predicated region
      $region33: #{stft_forward.3} parent=31 // pred_check
        %p267 = pneg %p116
      $region34: #{stft_forward.3} parent=31 // pred_check_branch
        %269 = sbr.rel (%p267) target = $region36
      $region35: #{stft_forward.3} parent=31 // pred_region
        %s270 = smul.u32 2, %s19
      $region36: #{stft_forward.3} parent=31 // pred_fallthru
        _
    $region32: #{stft_forward.3} parent=5 // pred_fallthru
      _
    %p271 = scmp.le.s32.totalorder 2, %s9
    // Predicated region
    $region37: #{stft_forward.3} parent=5 // pred_check
      %p272 = pneg %p271
    $region38: #{stft_forward.3} parent=5 // pred_check_branch
      %274 = sbr.rel (%p272) target = $region40
    $region39: #{stft_forward.3} parent=5 // pred_region
      %s275 = ssub.s32 %s9, 2
      // Predicated region
      $region41: #{stft_forward.3} parent=39 // pred_check
        %p276 = pneg %p122
      $region42: #{stft_forward.3} parent=39 // pred_check_branch
        %278 = sbr.rel (%p276) target = $region44
      $region43: #{stft_forward.3} parent=39 // pred_region
        %s279 = smul.u32 2, %s21
        %p280 = scmp.lt.s32.totalorder %s20, 1
        %s281 = scalar_select %p280, %s20, 1
        %p282 = scmp.lt.s32.totalorder %s279, 1
        %s283 = scalar_select %p282, %s279, 1
        %s284 = smul.addr %s281, 4
        %s285 = sadd.s32 %s283, %s284
        %s286 = smul.addr %s285, 8
        %s287 = scalar_lea.vmem %s3, %s286
      $region44: #{stft_forward.3} parent=39 // pred_fallthru
        _
    $region40: #{stft_forward.3} parent=5 // pred_fallthru
      _
  $region6: #{stft_forward.3} parent=0 // loop_footer
    %s13 = sadd.s32 1, %s9
  $region7: #{stft_forward.3} parent=0 // loop_footer_branch
    %8 = sbr.rel target = $region3
  $region8: #{stft_forward.3} parent=0 // loop_exit
    _

// kernel: stft_forward.2
$region0: #{stft_forward.2}
  #allocation0 [shape = 'u32[]', space=smem, size = 0x4, offset = 0x4, fixed_abs, tag = 'smem constant byte address 0x4 - core index']
  #allocation1 [shape = 'u32[72,128]{1,0:T(1,128)}', space=vmem, size = 0x9000, scoped, tag = 'internal scratch']
  %s0 = inlined_call_operand.vmem [shape: f32[2,8,384], index: 0, kind: input, shape index: {}, may-alias: {0,1}]
  %s1 = inlined_call_operand.vmem [shape: f32[2,8,384], index: 1, kind: input, shape index: {}, may-alias: {0,1}]
  %s2 = inlined_call_operand.vmem [shape: f32[2,9,8], index: 2, kind: input, shape index: {}]
  %s3 = inlined_call_operand.vmem [shape: f32[2,9,256], index: 3, kind: output, shape index: {0}]
  %s4 = inlined_call_operand.vmem [shape: f32[2,1,9,2], index: 4, kind: output, shape index: {1}]
  %5 = xla_tuple %s3, %s4
  %s6 = sld [smem:[#allocation0]]
  $region57: #{stft_forward.2} parent=0
    _
  %s8 = ssub.s32 1, %s6
  %s9 = scalar_select 0, %s8, %s6
  loop: start=0, step=1, limit=4
  $region2: #{stft_forward.2} parent=0 // loop_pre_header
    _
  $region3: #{stft_forward.2} parent=0 // loop_header
    %s11 = sphi 0, %s15
    %p12 = scmp.ge.s32.totalorder %s11, 4
    %s18 = sphi 0, %s37
    %s19 = sphi 0, %s33
    %s20 = sphi 0, %s29
    %s21 = sphi 0, %s18
    %s22 = sphi 0, %s19
    %s23 = sphi 0, %s20
    %s24 = sphi 0, %s21
    %s25 = sphi 0, %s22
    %s26 = sphi 0, %s23
    %s44 = sphi 0, %s46
    %s47 = sphi 0, %s44
    %s48 = sphi 0, %s47
    %s64 = sphi 0, %s48
    %s78 = sphi 0, %s80
    %s81 = sphi 0, %s78
    %s82 = sphi 0, %s81
    %s98 = sphi 0, %s82
    %s102 = sphi 0, %s102
    %s104 = sphi 0, %s102
    %s105 = sphi 0, %s104
    %s119 = sphi 0, %s105
    %s129 = sphi 0, %s131
    %s132 = sphi 0, %s129
    %s133 = sphi 0, %s132
    %s149 = sphi 0, %s133
    %s157 = sphi 0, %s159
    %s160 = sphi 0, %s157
    %s161 = sphi 0, %s160
    %s177 = sphi 0, %s161
  $region4: #{stft_forward.2} parent=0 // loop_header_branch
    %14 = sbr.rel (%p12) target = $region8
  $region5: #{stft_forward.2} parent=0 // loop_body
    %s16 = ssub.s32 %s11, 1
    %s17 = ssub.s32 %s11, 2
    %s27 = sadd.s32 1, %s20
    %p28 = scmp.ge.s32.totalorder %s27, 1
    %s29 = scalar_select %p28, 0, %s27
    %s30 = sadd.s32 1, %s19
    %s31 = scalar_select %p28, %s30, %s19
    %p32 = scmp.ge.s32.totalorder %s31, 1
    %s33 = scalar_select %p32, 0, %s31
    %s34 = sadd.s32 1, %s18
    %s35 = scalar_select %p32, %s34, %s18
    %p36 = scmp.ge.s32.totalorder %s35, 2
    %s37 = scalar_select %p36, 0, %s35
    %s38 = sadd.s32 %s19, %s20
    %s39 = sadd.s32 %s33, %s29
    %s40 = ssub.s32 %s18, %s37
    %s41 = ssub.s32 %s38, %s39
    %s42 = sor.u32 %s40, %s41
    %p43 = scmp.eq.s32.totalorder %s42, 0
    %s45 = sadd.s32 %s44, 1
    %s46 = scalar_select %p43, %s44, %s45
    %p49 = pneg %p43
    %p50 = scmp.eq.s32.totalorder %s11, 1
    %p51 = por %p49, %p50
    %p52 = scmp.ne.s32.totalorder %s44, %s47
    %p53 = scmp.eq.s32.totalorder %s11, 0
    %p54 = por %p52, %p53
    %p55 = scmp.ne.s32.totalorder %s44, %s47
    %p56 = scmp.eq.s32.totalorder %s16, 1
    %p57 = por %p55, %p56
    %p58 = scmp.ne.s32.totalorder %s47, %s48
    %p59 = scmp.eq.s32.totalorder %s16, 0
    %p60 = por %p58, %p59
    %p61 = scmp.ne.s32.totalorder %s47, %s48
    %p62 = scmp.eq.s32.totalorder %s17, 1
    %p63 = por %p61, %p62
    %p65 = scmp.ne.s32.totalorder %s48, %s64
    %p66 = scmp.eq.s32.totalorder %s17, 0
    %p67 = por %p65, %p66
    %s68 = sadd.s32 %s19, %s20
    %s69 = sadd.s32 %s68, 1
    %s70 = smul.u32 %s69, 2
    %s71 = sadd.s32 %s33, %s29
    %s72 = sadd.s32 %s71, 1
    %s73 = smul.u32 %s72, 2
    %s74 = ssub.s32 %s18, %s37
    %s75 = ssub.s32 %s70, %s73
    %s76 = sor.u32 %s74, %s75
    %p77 = scmp.eq.s32.totalorder %s76, 0
    %s79 = sadd.s32 %s78, 1
    %s80 = scalar_select %p77, %s78, %s79
    %p83 = pneg %p77
    %p84 = scmp.eq.s32.totalorder %s11, 1
    %p85 = por %p83, %p84
    %p86 = scmp.ne.s32.totalorder %s78, %s81
    %p87 = scmp.eq.s32.totalorder %s11, 0
    %p88 = por %p86, %p87
    %p89 = scmp.ne.s32.totalorder %s78, %s81
    %p90 = scmp.eq.s32.totalorder %s16, 1
    %p91 = por %p89, %p90
    %p92 = scmp.ne.s32.totalorder %s81, %s82
    %p93 = scmp.eq.s32.totalorder %s16, 0
    %p94 = por %p92, %p93
    %p95 = scmp.ne.s32.totalorder %s81, %s82
    %p96 = scmp.eq.s32.totalorder %s17, 1
    %p97 = por %p95, %p96
    %p99 = scmp.ne.s32.totalorder %s82, %s98
    %p100 = scmp.eq.s32.totalorder %s17, 0
    %p101 = por %p99, %p100
    %s103 = sadd.s32 %s102, 1
    %p106 = scmp.eq.s32.totalorder %s11, 1
    %p107 = scmp.ne.s32.totalorder %s102, %s104
    %p108 = scmp.eq.s32.totalorder %s11, 0
    %p109 = por %p107, %p108
    %p110 = scmp.ne.s32.totalorder %s102, %s104
    %p111 = scmp.eq.s32.totalorder %s16, 1
    %p112 = por %p110, %p111
    %p113 = scmp.ne.s32.totalorder %s104, %s105
    %p114 = scmp.eq.s32.totalorder %s16, 0
    %p115 = por %p113, %p114
    %p116 = scmp.ne.s32.totalorder %s104, %s105
    %p117 = scmp.eq.s32.totalorder %s17, 1
    %p118 = por %p116, %p117
    %p120 = scmp.ne.s32.totalorder %s105, %s119
    %p121 = scmp.eq.s32.totalorder %s17, 0
    %p122 = por %p120, %p121
    %s123 = sadd.s32 %s19, %s20
    %s124 = sadd.s32 %s33, %s29
    %s125 = ssub.s32 %s18, %s37
    %s126 = ssub.s32 %s123, %s124
    %s127 = sor.u32 %s125, %s126
    %p128 = scmp.eq.s32.totalorder %s127, 0
    %s130 = sadd.s32 %s129, 1
    %s131 = scalar_select %p128, %s129, %s130
    %p134 = pneg %p128
    %p135 = scmp.eq.s32.totalorder %s11, 1
    %p136 = por %p134, %p135
    %p137 = scmp.ne.s32.totalorder %s129, %s132
    %p138 = scmp.eq.s32.totalorder %s11, 0
    %p139 = por %p137, %p138
    %p140 = scmp.ne.s32.totalorder %s129, %s132
    %p141 = scmp.eq.s32.totalorder %s16, 1
    %p142 = por %p140, %p141
    %p143 = scmp.ne.s32.totalorder %s132, %s133
    %p144 = scmp.eq.s32.totalorder %s16, 0
    %p145 = por %p143, %p144
    %p146 = scmp.ne.s32.totalorder %s132, %s133
    %p147 = scmp.eq.s32.totalorder %s17, 1
    %p148 = por %p146, %p147
    %p150 = scmp.ne.s32.totalorder %s133, %s149
    %p151 = scmp.eq.s32.totalorder %s17, 0
    %p152 = por %p150, %p151
    %s153 = ssub.s32 %s18, %s37
    %s154 = ssub.s32 %s19, %s33
    %s155 = sor.u32 %s153, %s154
    %p156 = scmp.eq.s32.totalorder %s155, 0
    %s158 = sadd.s32 %s157, 1
    %s159 = scalar_select %p156, %s157, %s158
    %p162 = pneg %p156
    %p163 = scmp.eq.s32.totalorder %s11, 1
    %p164 = por %p162, %p163
    %p165 = scmp.ne.s32.totalorder %s157, %s160
    %p166 = scmp.eq.s32.totalorder %s11, 0
    %p167 = por %p165, %p166
    %p168 = scmp.ne.s32.totalorder %s157, %s160
    %p169 = scmp.eq.s32.totalorder %s16, 1
    %p170 = por %p168, %p169
    %p171 = scmp.ne.s32.totalorder %s160, %s161
    %p172 = scmp.eq.s32.totalorder %s16, 0
    %p173 = por %p171, %p172
    %p174 = scmp.ne.s32.totalorder %s160, %s161
    %p175 = scmp.eq.s32.totalorder %s17, 1
    %p176 = por %p174, %p175
    %p178 = scmp.ne.s32.totalorder %s161, %s177
    %p179 = scmp.eq.s32.totalorder %s17, 0
    %p180 = por %p178, %p179
    %p181 = scmp.le.s32.totalorder 1, %s11
    %p182 = scmp.lt.s32.totalorder %s11, 3
    %p183 = pnand %p181, %p182
    %p184 = pneg %p183
    // Predicated region
    $region9: #{stft_forward.2} parent=5 // pred_check
      _
    $region10: #{stft_forward.2} parent=5 // pred_check_branch
      %186 = sbr.rel (%p183) target = $region12
    $region11: #{stft_forward.2} parent=5 // pred_region
      %s187 = ssub.s32 %s11, 1
      // Predicated region
      $region13: #{stft_forward.2} parent=11 // pred_check
        %p188 = pneg %p115
      $region14: #{stft_forward.2} parent=11 // pred_check_branch
        %190 = sbr.rel (%p188) target = $region16
      $region15: #{stft_forward.2} parent=11 // pred_region
        _
      $region16: #{stft_forward.2} parent=11 // pred_fallthru
        _
    $region12: #{stft_forward.2} parent=5 // pred_fallthru
      _
    %p191 = scmp.lt.s32.totalorder %s11, 2
    // Predicated region
    $region17: #{stft_forward.2} parent=5 // pred_check
      %p192 = pneg %p191
    $region18: #{stft_forward.2} parent=5 // pred_check_branch
      %194 = sbr.rel (%p192) target = $region20
    $region19: #{stft_forward.2} parent=5 // pred_region
      // Predicated region
      $region21: #{stft_forward.2} parent=19 // pred_check
        %p195 = pneg %p54
      $region22: #{stft_forward.2} parent=19 // pred_check_branch
        %197 = sbr.rel (%p195) target = $region24
      $region23: #{stft_forward.2} parent=19 // pred_region
        %s198 = sadd.s32 %s19, %s20
        %s199 = smul.u32 2, %s198
        %s200 = ssub.s32 3, %s199
        %p201 = scmp.lt.s32.totalorder %s200, 2
        %s202 = scalar_select %p201, %s200, 2
        %s203 = smul.u32 8, %s202
        %p204 = scmp.lt.s32.totalorder %s18, 1
        %s205 = scalar_select %p204, %s18, 1
        %p206 = scmp.lt.s32.totalorder %s199, 2
        %s207 = scalar_select %p206, %s199, 2
        %s208 = smul.addr %s205, 3
        %s209 = sadd.s32 %s207, %s208
        %s210 = smul.addr %s209, 8
        %s211 = scalar_lea.vmem %s0, %s210
        %s212 = sadd.s32 %s19, %s20
        %s213 = smul.u32 2, %s212
        %s214 = ssub.s32 3, %s213
        %p215 = scmp.lt.s32.totalorder %s214, 2
        %s216 = scalar_select %p215, %s214, 2
        %s217 = smul.u32 8, %s216
      $region24: #{stft_forward.2} parent=19 // pred_fallthru
        _
      // Predicated region
      $region25: #{stft_forward.2} parent=19 // pred_check
        %p218 = pneg %p88
      $region26: #{stft_forward.2} parent=19 // pred_check_branch
        %220 = sbr.rel (%p218) target = $region28
      $region27: #{stft_forward.2} parent=19 // pred_region
        %s221 = sadd.s32 %s19, %s20
        %s222 = sadd.s32 %s221, 1
        %s223 = smul.u32 %s222, 2
        %p224 = scmp.lt.s32.totalorder %s18, 1
        %s225 = scalar_select %p224, %s18, 1
        %p226 = scmp.lt.s32.totalorder %s223, 2
        %s227 = scalar_select %p226, %s223, 2
        %s228 = smul.addr %s225, 3
        %s229 = sadd.s32 %s227, %s228
        %s230 = smul.addr %s229, 8
        %s231 = scalar_lea.vmem %s1, %s230
        %s232 = sadd.s32 %s19, %s20
        %s233 = sadd.s32 %s232, 1
        %s234 = smul.u32 %s233, 2
      $region28: #{stft_forward.2} parent=19 // pred_fallthru
        _
    $region20: #{stft_forward.2} parent=5 // pred_fallthru
      _
    %p235 = scmp.le.s32.totalorder 1, %s11
    %p236 = scmp.lt.s32.totalorder %s11, 3
    %p237 = pnand %p235, %p236
    %p238 = pneg %p237
    // Predicated region
    $region29: #{stft_forward.2} parent=5 // pred_check
      _
    $region30: #{stft_forward.2} parent=5 // pred_check_branch
      %240 = sbr.rel (%p237) target = $region32
    $region31: #{stft_forward.2} parent=5 // pred_region
      %s241 = ssub.s32 %s11, 1
      %s242 = sadd.s32 %s22, %s23
      %s243 = smul.u32 2, %s242
      %s244 = ssub.s32 3, %s243
      %p245 = scmp.lt.s32.totalorder %s244, 2
      %s246 = scalar_select %p245, %s244, 2
      %s247 = smul.u32 8, %s246
      %p248 = scmp.lt.s32.totalorder %s21, 1
      %s249 = scalar_select %p248, %s21, 1
      %p250 = scmp.lt.s32.totalorder %s243, 2
      %s251 = scalar_select %p250, %s243, 2
      %s252 = smul.addr %s249, 3
      %s253 = sadd.s32 %s251, %s252
      %s254 = smul.addr %s253, 8
      %s255 = scalar_lea.vmem %s0, %s254
      %p256 = pneg %p60
      %p257 = pneg %p57
      %s258 = sadd.s32 %s22, %s23
      %s259 = sadd.s32 %s258, 1
      %s260 = smul.u32 %s259, 2
      %p261 = scmp.lt.s32.totalorder %s21, 1
      %s262 = scalar_select %p261, %s21, 1
      %p263 = scmp.lt.s32.totalorder %s260, 2
      %s264 = scalar_select %p263, %s260, 2
      %s265 = smul.addr %s262, 3
      %s266 = sadd.s32 %s264, %s265
      %s267 = smul.addr %s266, 8
      %s268 = scalar_lea.vmem %s1, %s267
      %p269 = pneg %p94
      %p270 = pneg %p91
      %p271 = pneg %p115
      %p272 = pneg %p112
      %p273 = pneg %p145
      %p274 = pneg %p142
      %s275 = sadd.s32 %s22, %s23
      %s276 = smul.u32 2, %s275
      %p277 = scmp.lt.s32.totalorder %s21, 1
      %s278 = scalar_select %p277, %s21, 1
      %p279 = scmp.lt.s32.totalorder %s276, 1
      %s280 = scalar_select %p279, %s276, 1
      %s281 = smul.addr %s278, 4
      %s282 = sadd.s32 %s280, %s281
      %s283 = smul.addr %s282, 8
      %s284 = scalar_lea.vmem %s3, %s283
      %p285 = pneg %p173
      %p286 = pneg %p170
      %p287 = scmp.lt.s32.totalorder %s21, 1
      %s288 = scalar_select %p287, %s21, 1
      %p289 = scmp.lt.s32.totalorder %s22, 0
      %s290 = scalar_select %p289, %s22, 0
      %s291 = smul.addr %s290, 2
      %s292 = smul.addr %s288, 2
      %s293 = sadd.s32 %s291, %s292
      %s294 = smul.addr %s293, 8
      %s295 = scalar_lea.vmem %s4, %s294
      %s296 = sadd.s32 %s22, %s23
      %s297 = smul.u32 2, %s296
      %s298 = ssub.s32 3, %s297
      %p299 = scmp.lt.s32.totalorder %s298, 2
      %s300 = scalar_select %p299, %s298, 2
      %s301 = smul.u32 8, %s300
      %p302 = scmp.lt.s32.totalorder %s21, 1
      %s303 = scalar_select %p302, %s21, 1
      %p304 = scmp.lt.s32.totalorder %s297, 2
      %s305 = scalar_select %p304, %s297, 2
      %s306 = smul.addr %s303, 3
      %s307 = sadd.s32 %s305, %s306
      %s308 = smul.addr %s307, 8
      %s309 = scalar_lea.vmem %s0, %s308
      %s310 = sadd.s32 %s22, %s23
      %s311 = smul.u32 2, %s310
      %s312 = ssub.s32 3, %s311
      %p313 = scmp.lt.s32.totalorder %s312, 2
      %s314 = scalar_select %p313, %s312, 2
      %s315 = smul.u32 8, %s314
      %s316 = sadd.s32 %s22, %s23
      %s317 = sadd.s32 %s316, 1
      %s318 = smul.u32 %s317, 2
      %p319 = scmp.lt.s32.totalorder %s21, 1
      %s320 = scalar_select %p319, %s21, 1
      %p321 = scmp.lt.s32.totalorder %s318, 2
      %s322 = scalar_select %p321, %s318, 2
      %s323 = smul.addr %s320, 3
      %s324 = sadd.s32 %s322, %s323
      %s325 = smul.addr %s324, 8
      %s326 = scalar_lea.vmem %s1, %s325
      %s327 = sadd.s32 %s22, %s23
      %s328 = sadd.s32 %s327, 1
      %s329 = smul.u32 %s328, 2
      %s330 = sadd.s32 %s22, %s23
      %s331 = smul.u32 2, %s330
      %p332 = scmp.lt.s32.totalorder %s21, 1
      %s333 = scalar_select %p332, %s21, 1
      %p334 = scmp.lt.s32.totalorder %s331, 1
      %s335 = scalar_select %p334, %s331, 1
      %s336 = smul.addr %s333, 4
      %s337 = sadd.s32 %s335, %s336
      %s338 = smul.addr %s337, 8
      %s339 = scalar_lea.vmem %s3, %s338
      %s340 = sadd.s32 %s22, %s23
      %s341 = smul.u32 2, %s340
      %p342 = scmp.lt.s32.totalorder %s21, 1
      %s343 = scalar_select %p342, %s21, 1
      %p344 = scmp.lt.s32.totalorder %s22, 0
      %s345 = scalar_select %p344, %s22, 0
      %s346 = smul.addr %s345, 2
      %s347 = smul.addr %s343, 2
      %s348 = sadd.s32 %s346, %s347
      %s349 = smul.addr %s348, 8
      %s350 = scalar_lea.vmem %s4, %s349
      %v351 = vld [vmem:[%s309] sm:$0xff]
      %v352 = vld [vmem:[%s309 + $0x8] sm:$0xff]
      %v353 = vld [vmem:[%s326] sm:$0xff]
      %v354 = vld [vmem:[%s2] sm:$0xff]
      %v355 = vld [vmem:[%s2 + $0x8] sm:$0x1]
      %s356 = scalar_lea.vmem %s2, 16
      %v357 = vld [vmem:[%s356] sm:$0xff]
      %v358 = vld [vmem:[%s356 + $0x8] sm:$0x1]
      %362 = vrot.lane.b32.xlu0 %v351, 127
      %v363 = vpop.permute.xlu0 %362
      %364 = vrot.lane.b32.xlu0 %v352, 127
      %v365 = vpop.permute.xlu0 %364
      %366 = vrot.lane.b32.xlu0 %v353, 127
      %v367 = vpop.permute.xlu0 %366
      %vm368 = vcmask 1039360
      %v369 = vsel %vm368, %v363, %v365
      %v370 = vsel %vm368, %v365, %v367
      %vm373 = vcmask 64512
      %v375 = vsel %vm373, %v357, 0
      %v378 = vsel %vm373, %v358, 0
      %380 = vmatpush.msra.mxu0 0.0
      %381 = vmatpush.msra.mxu0 0.0
      %382 = vmatpush.msra.mxu0 0.0
      %383 = vmatpush.msra.mxu0 0.0
      %384 = vmatpush.msra.mxu0 0.0
      %385 = vmatpush.msra.mxu0 0.0
      %386 = vmatpush.msra.mxu0 0.0
      %387 = vmatpush.msra.mxu0 0.0
      %388 = vmatpush.msra.mxu0 0.0
      %389 = vmatpush.msra.mxu0 0.0
      %390 = vmatpush.msra.mxu0 0.0
      %391 = vmatpush.msra.mxu0 0.0
      %392 = vmatpush.msra.mxu0 0.0
      %393 = vmatpush.msra.mxu0 0.0
      %394 = vmatpush.msra.mxu0 0.0
      %395 = vmatpush.msra.mxu0 %v369
      %396 = vmatmul.f32.gmra.mxu0 %v375
      %v397 = vpop.f32.mrf.mxu0
      %v398 = vadd.f32 0.0, %v397
      %399 = vmatmul.f32.gmra.mxu0 %v378
      %v400 = vpop.f32.mrf.mxu0
      %v401 = vadd.f32 0.0, %v400
      %402 = vdwg.mxu0
      %403 = vmatpush.msra.mxu0 0.0
      %404 = vmatpush.msra.mxu0 0.0
      %405 = vmatpush.msra.mxu0 0.0
      %406 = vmatpush.msra.mxu0 0.0
      %407 = vmatpush.msra.mxu0 0.0
      %408 = vmatpush.msra.mxu0 0.0
      %409 = vmatpush.msra.mxu0 0.0
      %410 = vmatpush.msra.mxu0 0.0
      %411 = vmatpush.msra.mxu0 0.0
      %412 = vmatpush.msra.mxu0 0.0
      %413 = vmatpush.msra.mxu0 0.0
      %414 = vmatpush.msra.mxu0 0.0
      %415 = vmatpush.msra.mxu0 0.0
      %416 = vmatpush.msra.mxu0 0.0
      %417 = vmatpush.msra.mxu0 0.0
      %418 = vmatpush.msra.mxu0 %v370
      %419 = vmatmul.f32.gmra.mxu0 %v375
      %v420 = vpop.f32.mrf.mxu0
      %v421 = vadd.f32 0.0, %v420
      %422 = vmatmul.f32.gmra.mxu0 %v378
      %v423 = vpop.f32.mrf.mxu0
      %v424 = vadd.f32 0.0, %v423
      %425 = vdwg.mxu0
      %v427 = vsel %vm373, %v354, 0
      %v430 = vsel %vm373, %v355, 0
      %432 = vmatpush.msra.mxu0 0.0
      %433 = vmatpush.msra.mxu0 0.0
      %434 = vmatpush.msra.mxu0 0.0
      %435 = vmatpush.msra.mxu0 0.0
      %436 = vmatpush.msra.mxu0 0.0
      %437 = vmatpush.msra.mxu0 0.0
      %438 = vmatpush.msra.mxu0 0.0
      %439 = vmatpush.msra.mxu0 0.0
      %440 = vmatpush.msra.mxu0 0.0
      %441 = vmatpush.msra.mxu0 0.0
      %442 = vmatpush.msra.mxu0 0.0
      %443 = vmatpush.msra.mxu0 0.0
      %444 = vmatpush.msra.mxu0 0.0
      %445 = vmatpush.msra.mxu0 0.0
      %446 = vmatpush.msra.mxu0 0.0
      %447 = vmatpush.msra.mxu0 %v351
      %448 = vmatmul.f32.gmra.mxu0 %v427
      %v449 = vpop.f32.mrf.mxu0
      %v450 = vadd.f32 %v398, %v449
      %451 = vmatmul.f32.gmra.mxu0 %v430
      %v452 = vpop.f32.mrf.mxu0
      %v453 = vadd.f32 %v401, %v452
      %454 = vdwg.mxu0
      %455 = vmatpush.msra.mxu0 0.0
      %456 = vmatpush.msra.mxu0 0.0
      %457 = vmatpush.msra.mxu0 0.0
      %458 = vmatpush.msra.mxu0 0.0
      %459 = vmatpush.msra.mxu0 0.0
      %460 = vmatpush.msra.mxu0 0.0
      %461 = vmatpush.msra.mxu0 0.0
      %462 = vmatpush.msra.mxu0 0.0
      %463 = vmatpush.msra.mxu0 0.0
      %464 = vmatpush.msra.mxu0 0.0
      %465 = vmatpush.msra.mxu0 0.0
      %466 = vmatpush.msra.mxu0 0.0
      %467 = vmatpush.msra.mxu0 0.0
      %468 = vmatpush.msra.mxu0 0.0
      %469 = vmatpush.msra.mxu0 0.0
      %470 = vmatpush.msra.mxu0 %v352
      %471 = vmatmul.f32.gmra.mxu0 %v427
      %v472 = vpop.f32.mrf.mxu0
      %v473 = vadd.f32 %v421, %v472
      %474 = vmatmul.f32.gmra.mxu0 %v430
      %v475 = vpop.f32.mrf.mxu0
      %v476 = vadd.f32 %v424, %v475
      %477 = vdwg.mxu0
      %478 = vst [vmem:[%s339] sm:$0xff] %v450
      %479 = vst [vmem:[%s339 + $0x8] sm:$0xff] %v473
      %480 = vst [vmem:[%s339 + $0x10] sm:$0x1] %v453
      %481 = vst [vmem:[%s339 + $0x18] sm:$0x1] %v476
      %v482 = vadd.f32 %v450, %v473
      %483 = vadd.xlane.f32.xlu0 %v482
      %v484 = vpop.xlane.xlu0 %483
      %vm485 = vcmask 1040384
      %v486 = vsel %vm485, %v453, 0.0
      %v487 = vsel %vm485, %v476, 0.0
      %v488 = vadd.f32 %v486, %v487
      %489 = vadd.xlane.f32.xlu0 %v488
      %v490 = vpop.xlane.xlu0 %489
      %v491 = vmul.f32 %v450, %v450
      %v492 = vmul.f32 %v473, %v473
      %v493 = vmul.f32 %v453, %v453
      %v494 = vmul.f32 %v476, %v476
      %v495 = vadd.f32 %v491, %v492
      %496 = vadd.xlane.f32.xlu0 %v495
      %v497 = vpop.xlane.xlu0 %496
      %v498 = vsel %vm485, %v493, 0.0
      %v499 = vsel %vm485, %v494, 0.0
      %v500 = vadd.f32 %v498, %v499
      %501 = vadd.xlane.f32.xlu0 %v500
      %v502 = vpop.xlane.xlu0 %501
      %p503 = scmp.eq.s32.totalorder %s23, 0
      // Predicated region
      $region33: #{stft_forward.2} parent=31 // pred_check
        %p504 = pneg %p503
      $region34: #{stft_forward.2} parent=31 // pred_check_branch
        %506 = sbr.rel (%p504) target = $region36
      $region35: #{stft_forward.2} parent=31 // pred_region
        %vm507 = vcmask 15360
        %508 = vst.msk [vmem:[%s350] sm:$0xff] %vm507, 0.0
        %vm509 = vcmask 8192
        %510 = vst.msk [vmem:[%s350 + $0x8] sm:$0x1] %vm509, 0.0
      $region36: #{stft_forward.2} parent=31 // pred_fallthru
        _
      %v511 = vld [vmem:[%s350] sm:$0xff]
      %v512 = vld [vmem:[%s350 + $0x8] sm:$0x1]
      %v513 = vadd.f32 %v511, %v484
      %v514 = vadd.f32 %v512, %v490
      %vm515 = vcmask 7168
      %516 = vst.msk [vmem:[%s350] sm:$0xff] %vm515, %v513
      %vm517 = vcmask 0
      %518 = vst.msk [vmem:[%s350 + $0x8] sm:$0x1] %vm517, %v514
      %v519 = vld [vmem:[%s350] sm:$0xff]
      %v520 = vld [vmem:[%s350 + $0x8] sm:$0x1]
      %v521 = vadd.f32 %v519, %v497
      %v522 = vadd.f32 %v520, %v502
      %vm523 = vcmask 15368
      %524 = vst.msk [vmem:[%s350] sm:$0xff] %vm523, %v521
      %vm525 = vcmask 8200
      %526 = vst.msk [vmem:[%s350 + $0x8] sm:$0x1] %vm525, %v522
      %s527 = sadd.s32 %s22, %s23
      %s528 = smul.u32 2, %s527
      %p529 = scmp.lt.s32.totalorder %s21, 1
      %s530 = scalar_select %p529, %s21, 1
      %p531 = scmp.lt.s32.totalorder %s528, 1
      %s532 = scalar_select %p531, %s528, 1
      %s533 = smul.addr %s530, 4
      %s534 = sadd.s32 %s532, %s533
      %s535 = smul.addr %s534, 8
      %s536 = scalar_lea.vmem %s3, %s535
      %p537 = scmp.lt.s32.totalorder %s21, 1
      %s538 = scalar_select %p537, %s21, 1
      %p539 = scmp.lt.s32.totalorder %s22, 0
      %s540 = scalar_select %p539, %s22, 0
      %s541 = smul.addr %s540, 2
      %s542 = smul.addr %s538, 2
      %s543 = sadd.s32 %s541, %s542
      %s544 = smul.addr %s543, 8
      %s545 = scalar_lea.vmem %s4, %s544
      // Predicated region
      $region37: #{stft_forward.2} parent=31 // pred_check
        %p546 = pneg %p142
      $region38: #{stft_forward.2} parent=31 // pred_check_branch
        %548 = sbr.rel (%p546) target = $region40
      $region39: #{stft_forward.2} parent=31 // pred_region
        %s549 = sadd.s32 %s22, %s23
        %s550 = smul.u32 2, %s549
      $region40: #{stft_forward.2} parent=31 // pred_fallthru
        _
      // Predicated region
      $region41: #{stft_forward.2} parent=31 // pred_check
        %p551 = pneg %p170
      $region42: #{stft_forward.2} parent=31 // pred_check_branch
        %553 = sbr.rel (%p551) target = $region44
      $region43: #{stft_forward.2} parent=31 // pred_region
        _
      $region44: #{stft_forward.2} parent=31 // pred_fallthru
        _
    $region32: #{stft_forward.2} parent=5 // pred_fallthru
      _
    %p554 = scmp.le.s32.totalorder 2, %s11
    // Predicated region
    $region45: #{stft_forward.2} parent=5 // pred_check
      %p555 = pneg %p554
    $region46: #{stft_forward.2} parent=5 // pred_check_branch
      %557 = sbr.rel (%p555) target = $region48
    $region47: #{stft_forward.2} parent=5 // pred_region
      %s558 = ssub.s32 %s11, 2
      // Predicated region
      $region49: #{stft_forward.2} parent=47 // pred_check
        %p559 = pneg %p148
      $region50: #{stft_forward.2} parent=47 // pred_check_branch
        %561 = sbr.rel (%p559) target = $region52
      $region51: #{stft_forward.2} parent=47 // pred_region
        %s562 = sadd.s32 %s25, %s26
        %s563 = smul.u32 2, %s562
        %p564 = scmp.lt.s32.totalorder %s24, 1
        %s565 = scalar_select %p564, %s24, 1
        %p566 = scmp.lt.s32.totalorder %s563, 1
        %s567 = scalar_select %p566, %s563, 1
        %s568 = smul.addr %s565, 4
        %s569 = sadd.s32 %s567, %s568
        %s570 = smul.addr %s569, 8
        %s571 = scalar_lea.vmem %s3, %s570
      $region52: #{stft_forward.2} parent=47 // pred_fallthru
        _
      // Predicated region
      $region53: #{stft_forward.2} parent=47 // pred_check
        %p572 = pneg %p176
      $region54: #{stft_forward.2} parent=47 // pred_check_branch
        %574 = sbr.rel (%p572) target = $region56
      $region55: #{stft_forward.2} parent=47 // pred_region
        %p575 = scmp.lt.s32.totalorder %s24, 1
        %s576 = scalar_select %p575, %s24, 1
        %p577 = scmp.lt.s32.totalorder %s25, 0
        %s578 = scalar_select %p577, %s25, 0
        %s579 = smul.addr %s578, 2
        %s580 = smul.addr %s576, 2
        %s581 = sadd.s32 %s579, %s580
        %s582 = smul.addr %s581, 8
        %s583 = scalar_lea.vmem %s4, %s582
      $region56: #{stft_forward.2} parent=47 // pred_fallthru
        _
    $region48: #{stft_forward.2} parent=5 // pred_fallthru
      _
  $region6: #{stft_forward.2} parent=0 // loop_footer
    %s15 = sadd.s32 1, %s11
  $region7: #{stft_forward.2} parent=0 // loop_footer_branch
    %10 = sbr.rel target = $region3
  $region8: #{stft_forward.2} parent=0 // loop_exit
    _

</llo_original>
